<compile_context>
chip_gen: v7x
topology: tpu7x:2x2x1
jax: 0.10.0
libtpu: 0.0.40
codegen_flags: <defaults>
</compile_context>

<pallas_src>
import functools

import jax
import jax.numpy as jnp
from jax import lax
from jax.experimental import pallas as pl
from jax.experimental.pallas import tpu as pltpu


_MAX_ROW_TILE = 512     # review: 128 -> 512 (~85% of HBM roofline, fits VMEM)
_MAX_COL_TILE = 512
_FUSED_MAX_ROWS = 256   # at/below this on both axes, use the single fused kernel


def _round_up(x, mult):
    return ((x + mult - 1) // mult) * mult


def _row_tile(rows, max_tile=_MAX_ROW_TILE):
    """Legal row tile: == rows (full dim) or a multiple of 8.
    Mid-size rows are split into >=2 grid steps (v7x megacore); large rows
    use 512-row tiles."""
    if rows > max_tile:
        return max_tile
    if rows > 8:
        return _round_up(pl.cdiv(rows, 2), 8)
    return rows


def _col_tile(cols, max_tile=_MAX_COL_TILE):
    """Legal output-column tile: == cols (full dim) or a multiple of 128
    (keeps the output stores lane-dense / unmasked)."""
    if cols > max_tile:
        return max_tile
    if cols > 128:
        return _round_up(pl.cdiv(cols, 2), 128)
    return cols


# ---------------------------------------------------------------------------
# Kernels
# ---------------------------------------------------------------------------
def _proj_norm_kernel(x_ref, w_ref, out_ref):
    """out = l2norm(x @ W).  x: [tr, D_in] f32 (cast to bf16 on the VPU here,
    not in a wrapper pass), W: [D_in, D] bf16 -> out [tr, D] bf16."""
    p = jnp.dot(x_ref[...].astype(jnp.bfloat16), w_ref[...],
                preferred_element_type=jnp.float32)
    inv = lax.rsqrt(jnp.sum(p * p, axis=-1, keepdims=True) + 1e-8)
    out_ref[...] = (p * inv).astype(out_ref.dtype)


def _similarity_kernel(img_ref, txt_ref, out_ref):
    """out[i, j] = <img_i, txt_j>.  NT dot_general contracting the shared last
    axis (no XLU transpose); bf16 operands, f32 MXU accumulation, bf16 store
    (halves the HBM writeback of the mem-bound stage)."""
    out_ref[...] = lax.dot_general(
        img_ref[...], txt_ref[...],
        dimension_numbers=(((1,), (1,)), ((), ())),
        preferred_element_type=jnp.float32).astype(out_ref.dtype)


def _fused_score_kernel(img_ref, txt_ref, wi_ref, wt_ref, out_ref):
    """Single-launch small-batch path: both normalized projections plus the
    similarity matmul, entirely in VMEM (no HBM round trips for intermediates,
    no padding of tiny m/n up to a 128 tile)."""
    ip = jnp.dot(img_ref[...].astype(jnp.bfloat16), wi_ref[...],
                 preferred_element_type=jnp.float32)
    ip = ip * lax.rsqrt(jnp.sum(ip * ip, axis=-1, keepdims=True) + 1e-8)
    tp = jnp.dot(txt_ref[...].astype(jnp.bfloat16), wt_ref[...],
                 preferred_element_type=jnp.float32)
    tp = tp * lax.rsqrt(jnp.sum(tp * tp, axis=-1, keepdims=True) + 1e-8)
    out_ref[...] = lax.dot_general(
        ip.astype(jnp.bfloat16), tp.astype(jnp.bfloat16),
        dimension_numbers=(((1,), (1,)), ((), ())),
        preferred_element_type=jnp.float32).astype(out_ref.dtype)


# ---------------------------------------------------------------------------
# Wrappers
# ---------------------------------------------------------------------------
def _project(x_f32, w_bf16, tile_rows):
    """Normalized projection, gridded over row tiles (weights pinned)."""
    rows, d_in = x_f32.shape
    d_out = w_bf16.shape[1]
    cost = pl.CostEstimate(
        flops=2 * rows * d_in * d_out + 3 * rows * d_out,
        transcendentals=rows,
        bytes_accessed=rows * d_in * 4 + d_in * d_out * 2 + rows * d_out * 2)
    return pl.pallas_call(
        _proj_norm_kernel,
        out_shape=jax.ShapeDtypeStruct((rows, d_out), jnp.bfloat16),
        grid=(pl.cdiv(rows, tile_rows),),
        in_specs=[
            pl.BlockSpec((tile_rows, d_in), lambda i: (i, 0)),
            pl.BlockSpec((d_in, d_out), lambda i: (0, 0)),   # weights pinned
        ],
        out_specs=pl.BlockSpec((tile_rows, d_out), lambda i: (i, 0)),
        compiler_params=pltpu.CompilerParams(
            dimension_semantics=("parallel",)),
        cost_estimate=cost,
    )(x_f32, w_bf16)


def _similarity(img_n, txt_n, tm, tn):
    """Tiled [M, N] similarity matmul; both grid axes independent."""
    m, d = img_n.shape
    n = txt_n.shape[0]
    cost = pl.CostEstimate(
        flops=2 * m * n * d,
        transcendentals=0,
        bytes_accessed=m * d * 2 + n * d * 2 + m * n * 2)
    return pl.pallas_call(
        _similarity_kernel,
        out_shape=jax.ShapeDtypeStruct((m, n), jnp.bfloat16),
        grid=(pl.cdiv(m, tm), pl.cdiv(n, tn)),
        in_specs=[
            pl.BlockSpec((tm, d), lambda i, j: (i, 0)),
            pl.BlockSpec((tn, d), lambda i, j: (j, 0)),
        ],
        out_specs=pl.BlockSpec((tm, tn), lambda i, j: (i, j)),
        compiler_params=pltpu.CompilerParams(
            dimension_semantics=("parallel", "parallel")),
        cost_estimate=cost,
    )(img_n, txt_n)


@jax.jit
def _score_pallas(img_feat, txt_emb, w_img_bf16, w_txt_bf16):
    m, d_img = img_feat.shape
    n, d_emb = txt_emb.shape
    d = w_img_bf16.shape[1]

    if m <= _FUSED_MAX_ROWS and n <= _FUSED_MAX_ROWS:
        # Small-batch regime: one fused kernel, everything resident in VMEM.
        cost = pl.CostEstimate(
            flops=2 * m * d_img * d + 2 * n * d_emb * d + 2 * m * n * d,
            transcendentals=m + n,
            bytes_accessed=(m * d_img * 4 + n * d_emb * 4
                            + (d_img + d_emb) * d * 2 + m * n * 2))
        scores = pl.pallas_call(
            _fused_score_kernel,
            out_shape=jax.ShapeDtypeStruct((m, n), jnp.bfloat16),
            cost_estimate=cost,
        )(img_feat, txt_emb, w_img_bf16, w_txt_bf16)
    else:
        # Stage 1: projection + L2 norm (text work hoisted out of the M loop).
        img_n = _project(img_feat, w_img_bf16, _row_tile(m))
        txt_n = _project(txt_emb, w_txt_bf16, _row_tile(n))
        # Stage 2: tiled [M, N] similarity matmul.
        scores = _similarity(img_n, txt_n, _row_tile(m), _col_tile(n))

    return scores.astype(jnp.float32)


class PallasScore:
    """JAX/Pallas analogue of t2v_metrics Score with a synthetic CLIP-style
    score model (the real Score wraps an abstract checkpoint-backed model)."""

    def __init__(self, d_img=128, d_emb=128, d_proj=128, vocab=32, seed=0):
        # MXU efficiency + lane-dense stores want 128-aligned feature dims.
        assert d_img % 128 == 0 and d_emb % 128 == 0 and d_proj % 128 == 0
        k = jax.random.PRNGKey(seed)
        k_e, k_wi, k_wt = jax.random.split(k, 3)
        # Deterministic synthetic parameters (no checkpoint load).
        self.embed_table = jax.random.normal(k_e, (vocab, d_emb), jnp.float32) * 0.02
        # Pre-cast weights to bf16 once (no per-forward cast pass).
        self.w_img = (jax.random.normal(k_wi, (d_img, d_proj), jnp.float32)
                      * 0.02).astype(jnp.bfloat16)
        self.w_txt = (jax.random.normal(k_wt, (d_emb, d_proj), jnp.float32)
                      * 0.02).astype(jnp.bfloat16)

    def forward(self, image_features, input_ids, labels=None):
        """image_features: [M, D_IMG] (or list of [D_IMG]);
           input_ids:      [N, L] int32 (or list of [L]).
           Returns scores  [M, N] float32."""
        if isinstance(image_features, (list, tuple)):
            image_features = jnp.stack([jnp.asarray(x) for x in image_features])
        else:
            image_features = jnp.asarray(image_features)
        if image_features.ndim == 1:
            image_features = image_features[None, :]
        if isinstance(input_ids, (list, tuple)):
            input_ids = jnp.stack([jnp.asarray(x) for x in input_ids])
        else:
            input_ids = jnp.asarray(input_ids)
        if input_ids.ndim == 1:
            input_ids = input_ids[None, :]
        # TODO(synk): `labels` are unused by the synthetic score model.

        # Glue: embedding gather + mean pool over the sequence axis.
        txt_emb = jnp.take(self.embed_table, input_ids, axis=0).mean(axis=1)

        return _score_pallas(image_features.astype(jnp.float32), txt_emb,
                             self.w_img, self.w_txt)


def _reference_scores(scorer, image_features, txt_emb):
    """Plain-JAX reference using the same bf16-operand / f32-accum recipe."""
    def proj_norm(x, w):
        p = jnp.dot(x.astype(jnp.bfloat16), w, preferred_element_type=jnp.float32)
        return p * lax.rsqrt((p * p).sum(-1, keepdims=True) + 1e-8)

    ipn = proj_norm(image_features, scorer.w_img).astype(jnp.bfloat16)
    tpn = proj_norm(txt_emb, scorer.w_txt).astype(jnp.bfloat16)
    return jnp.dot(ipn, tpn.T, preferred_element_type=jnp.float32)


if __name__ == "__main__":
    D_IMG, D_EMB, D_PROJ = 128, 128, 128
    L, VOCAB = 8, 32
    scorer = PallasScore(d_img=D_IMG, d_emb=D_EMB, d_proj=D_PROJ,
                         vocab=VOCAB, seed=0)

    key = jax.random.PRNGKey(0)
    k1, k2, k3, k4 = jax.random.split(key, 4)

    # --- small-batch regime (fused single kernel): m=2 images, n=4 texts ---
    M, N = 2, 4
    image_features = jax.random.normal(k1, (M, D_IMG), jnp.float32)
    input_ids = jax.random.randint(k2, (N, L), 0, VOCAB, jnp.int32)
    scores = jax.block_until_ready(scorer.forward(image_features, input_ids))
    assert scores.shape == (M, N), scores.shape

    txt_emb = jnp.take(scorer.embed_table, input_ids, axis=0).mean(axis=1)
    ref = _reference_scores(scorer, image_features, txt_emb)
    assert jnp.allclose(scores, ref, atol=2e-2, rtol=2e-2), (
        float(jnp.max(jnp.abs(scores - ref))))

    # --- larger regime (tiled two-stage path: multi-step grids, ragged tails) ---
    M2, N2 = 384, 320
    image_features2 = jax.random.normal(k3, (M2, D_IMG), jnp.float32)
    input_ids2 = jax.random.randint(k4, (N2, L), 0, VOCAB, jnp.int32)
    scores2 = jax.block_until_ready(scorer.forward(image_features2, input_ids2))
    assert scores2.shape == (M2, N2), scores2.shape

    txt_emb2 = jnp.take(scorer.embed_table, input_ids2, axis=0).mean(axis=1)
    ref2 = _reference_scores(scorer, image_features2, txt_emb2)
    assert jnp.allclose(scores2, ref2, atol=2e-2, rtol=2e-2), (
        float(jnp.max(jnp.abs(scores2 - ref2))))

    print("KERNEL_OK")
</pallas_src>

<mosaic_0001>
module attributes {stable_mosaic.version = 11 : i64} {
  func.func @_fused_score_kernel(%arg0: memref<2x128xf32, #tpu.memory_space<vmem>>, %arg1: memref<4x128xf32, #tpu.memory_space<vmem>>, %arg2: memref<128x128xbf16, #tpu.memory_space<vmem>>, %arg3: memref<128x128xbf16, #tpu.memory_space<vmem>>, %arg4: memref<2x4xbf16, #tpu.memory_space<vmem>>) attributes {dimension_semantics = [], scalar_prefetch = 0 : i64, scratch_operands = 0 : i64, tpu.core_type = #tpu.core_type<tc>} {
    %c0 = arith.constant 0 : index
    %c0_0 = arith.constant 0 : index
    %0 = vector.load %arg0[%c0, %c0_0] : memref<2x128xf32, #tpu.memory_space<vmem>>, vector<2x128xf32>
    %1 = arith.truncf %0 : vector<2x128xf32> to vector<2x128xbf16>
    %c0_1 = arith.constant 0 : index
    %c0_2 = arith.constant 0 : index
    %2 = vector.load %arg2[%c0_1, %c0_2] : memref<128x128xbf16, #tpu.memory_space<vmem>>, vector<128x128xbf16>
    %cst = arith.constant dense<0.000000e+00> : vector<2x128xf32>
    %3 = tpu.matmul %1, %2, %cst {dimension_numbers = #tpu.dot_dimension_numbers<[1], [0], [0], [1], [0, 0, 1, 1], [], []>} : vector<2x128xbf16>, vector<128x128xbf16>, vector<2x128xf32> -> vector<2x128xf32>
    %4 = arith.mulf %3, %3 : vector<2x128xf32>
    %cst_3 = arith.constant dense<0.000000e+00> : vector<2xf32>
    %5 = vector.multi_reduction <add>, %4, %cst_3 [1] : vector<2x128xf32> to vector<2xf32>
    %6 = vector.shape_cast %5 : vector<2xf32> to vector<2x1xf32>
    %cst_4 = arith.constant 9.99999993E-9 : f32
    %7 = vector.broadcast %cst_4 : f32 to vector<2x1xf32>
    %8 = arith.addf %6, %7 : vector<2x1xf32>
    %9 = math.rsqrt %8 : vector<2x1xf32>
    %10 = vector.broadcast %9 : vector<2x1xf32> to vector<2x128xf32>
    %11 = arith.mulf %3, %10 : vector<2x128xf32>
    %c0_5 = arith.constant 0 : index
    %c0_6 = arith.constant 0 : index
    %12 = vector.load %arg1[%c0_5, %c0_6] : memref<4x128xf32, #tpu.memory_space<vmem>>, vector<4x128xf32>
    %13 = arith.truncf %12 : vector<4x128xf32> to vector<4x128xbf16>
    %c0_7 = arith.constant 0 : index
    %c0_8 = arith.constant 0 : index
    %14 = vector.load %arg3[%c0_7, %c0_8] : memref<128x128xbf16, #tpu.memory_space<vmem>>, vector<128x128xbf16>
    %cst_9 = arith.constant dense<0.000000e+00> : vector<4x128xf32>
    %15 = tpu.matmul %13, %14, %cst_9 {dimension_numbers = #tpu.dot_dimension_numbers<[1], [0], [0], [1], [0, 0, 1, 1], [], []>} : vector<4x128xbf16>, vector<128x128xbf16>, vector<4x128xf32> -> vector<4x128xf32>
    %16 = arith.mulf %15, %15 : vector<4x128xf32>
    %cst_10 = arith.constant dense<0.000000e+00> : vector<4xf32>
    %17 = vector.multi_reduction <add>, %16, %cst_10 [1] : vector<4x128xf32> to vector<4xf32>
    %18 = vector.shape_cast %17 : vector<4xf32> to vector<4x1xf32>
    %cst_11 = arith.constant 9.99999993E-9 : f32
    %19 = vector.broadcast %cst_11 : f32 to vector<4x1xf32>
    %20 = arith.addf %18, %19 : vector<4x1xf32>
    %21 = math.rsqrt %20 : vector<4x1xf32>
    %22 = vector.broadcast %21 : vector<4x1xf32> to vector<4x128xf32>
    %23 = arith.mulf %15, %22 : vector<4x128xf32>
    %24 = arith.truncf %11 : vector<2x128xf32> to vector<2x128xbf16>
    %25 = arith.truncf %23 : vector<4x128xf32> to vector<4x128xbf16>
    %cst_12 = arith.constant dense<0.000000e+00> : vector<2x4xf32>
    %26 = tpu.matmul %24, %25, %cst_12 {dimension_numbers = #tpu.dot_dimension_numbers<[1], [1], [0], [0], [0, 0, 1, 0], [], []>} : vector<2x128xbf16>, vector<4x128xbf16>, vector<2x4xf32> -> vector<2x4xf32>
    %27 = arith.truncf %26 : vector<2x4xf32> to vector<2x4xbf16>
    %c0_13 = arith.constant 0 : index
    %c0_14 = arith.constant 0 : index
    %28 = vector.load %arg4[%c0_13, %c0_14] : memref<2x4xbf16, #tpu.memory_space<vmem>>, vector<2x4xbf16>
    tpu.vector_store %arg4[%c0_13, %c0_14], %27 {strides = array<i32>} : memref<2x4xbf16, #tpu.memory_space<vmem>>, vector<2x4xbf16>,
    return
  }
}

</mosaic_0001>

<llo_original>
// kernel: _score_pallas.1
$region0: #{_score_pallas.1}
  #allocation0 [shape = 'u32[]', space=smem, size = 0x4, offset = 0x4, fixed_abs, tag = 'smem constant byte address 0x4 - core index']
  #allocation1 [shape = 'u32[144,128]{1,0:T(1,128)}', space=vmem, size = 0x12000, scoped, tag = 'internal scratch']
  %s0 = inlined_call_operand.hbm [shape: f32[2,128], index: 0, kind: input, shape index: {}]
  %s1 = inlined_call_operand.hbm [shape: f32[4,128], index: 1, kind: input, shape index: {}]
  %s2 = inlined_call_operand.hbm [shape: bf16[128,128], index: 2, kind: input, shape index: {}]
  %s3 = inlined_call_operand.hbm [shape: bf16[128,128], index: 3, kind: input, shape index: {}]
  %s4 = inlined_call_operand.vmem [shape: bf16[2,4], index: 4, kind: output, shape index: {}]
  %s5 = sld [smem:[#allocation0]]
  $region42: #{_score_pallas.1} parent=0
    _
  %s7 = ssub.s32 1, %s5
  %s8 = scalar_select 0, %s7, %s5
  $region1: #{_score_pallas.1} parent=0
    #allocation2 [shape = 'u8[1024]{0}', space=vmem, size = 0x400, scoped, tag = 'input window, operand 0, single buffered']
    #allocation3 [shape = 's32[1]{0}', space=sflag, size = 0x4, scoped, tag = 'scoped memory for _score_pallas.1']
    #allocation4 [shape = 'u8[2048]{0}', space=vmem, size = 0x800, scoped, tag = 'input window, operand 1, single buffered']
    #allocation5 [shape = 's32[1]{0}', space=sflag, size = 0x4, scoped, tag = 'scoped memory for _score_pallas.1']
    #allocation6 [shape = 'u8[32768]{0}', space=vmem, size = 0x8000, scoped, tag = 'input window, operand 2, single buffered']
    #allocation7 [shape = 'u8[32768]{0}', space=vmem, size = 0x8000, scoped, tag = 'input window, operand 3, single buffered']
    #allocation8 [shape = 's32[1]{0}', space=sflag, size = 0x4, scoped, tag = 'scoped memory for _score_pallas.1']
    %9 = vsyncpa [#allocation3], 0
    %10 = vsyncpa [#allocation5], 0
    %11 = vsyncpa [#allocation8], 0
    // Predicated region
    $region2: #{_score_pallas.1} parent=1 // pred_check
      _
    $region3: #{_score_pallas.1} parent=1 // pred_check_branch
      %13 = sbr.rel (0) target = $region5
    $region4: #{_score_pallas.1} parent=1 // pred_region
      %s15 = ssub.s32 32, 32
      %16 = vsyncadd [#allocation3], %s15
      %s18 = sshll.u32 [#allocation2], 4
      %s19 = int_to_ptr.vmem [resolvable:$true] %s18
      %21 = dma.hbm_to_vmem [thread:$0]  %s0, 32, %s19, [#allocation3]
    $region5: #{_score_pallas.1} parent=1 // pred_fallthru
      _
    // Predicated region
    $region6: #{_score_pallas.1} parent=1 // pred_check
      _
    $region7: #{_score_pallas.1} parent=1 // pred_check_branch
      %23 = sbr.rel (0) target = $region9
    $region8: #{_score_pallas.1} parent=1 // pred_region
      %s25 = ssub.s32 64, 64
      %26 = vsyncadd [#allocation5], %s25
      %s28 = sshll.u32 [#allocation4], 4
      %s29 = int_to_ptr.vmem [resolvable:$true] %s28
      %31 = dma.hbm_to_vmem [thread:$0]  %s1, 64, %s29, [#allocation5]
    $region9: #{_score_pallas.1} parent=1 // pred_fallthru
      _
    // Predicated region
    $region10: #{_score_pallas.1} parent=1 // pred_check
      _
    $region11: #{_score_pallas.1} parent=1 // pred_check_branch
      %33 = sbr.rel (0) target = $region13
    $region12: #{_score_pallas.1} parent=1 // pred_region
      %s35 = ssub.s32 1024, 1024
      %36 = vsyncadd [#allocation5], %s35
      %s37 = sshll.u32 [#allocation6], 4
      %s38 = int_to_ptr.vmem [resolvable:$true] %s37
      %43 = dma.hbm_to_vmem [thread:$0]  %s2, 1024, %s38, [#allocation5], 64, 64, 4
    $region13: #{_score_pallas.1} parent=1 // pred_fallthru
      _
    // Predicated region
    $region14: #{_score_pallas.1} parent=1 // pred_check
      _
    $region15: #{_score_pallas.1} parent=1 // pred_check_branch
      %45 = sbr.rel (0) target = $region17
    $region16: #{_score_pallas.1} parent=1 // pred_region
      %s47 = ssub.s32 1024, 1024
      %48 = vsyncadd [#allocation8], %s47
      %s49 = sshll.u32 [#allocation7], 4
      %s50 = int_to_ptr.vmem [resolvable:$true] %s49
      %55 = dma.hbm_to_vmem [thread:$0]  %s3, 1024, %s50, [#allocation8], 64, 64, 4
    $region17: #{_score_pallas.1} parent=1 // pred_fallthru
      _
    // Predicated region
    $region18: #{_score_pallas.1} parent=1 // pred_check
      _
    $region19: #{_score_pallas.1} parent=1 // pred_check_branch
      %57 = sbr.rel (0) target = $region21
    $region20: #{_score_pallas.1} parent=1 // pred_region
      %58 = dma.done [#allocation3], 32
    $region21: #{_score_pallas.1} parent=1 // pred_fallthru
      _
    // Predicated region
    $region22: #{_score_pallas.1} parent=1 // pred_check
      _
    $region23: #{_score_pallas.1} parent=1 // pred_check_branch
      %60 = sbr.rel (0) target = $region25
    $region24: #{_score_pallas.1} parent=1 // pred_region
      %61 = dma.done [#allocation5], 64
    $region25: #{_score_pallas.1} parent=1 // pred_fallthru
      _
    // Predicated region
    $region26: #{_score_pallas.1} parent=1 // pred_check
      _
    $region27: #{_score_pallas.1} parent=1 // pred_check_branch
      %63 = sbr.rel (0) target = $region29
    $region28: #{_score_pallas.1} parent=1 // pred_region
      %64 = dma.done [#allocation5], 1024
    $region29: #{_score_pallas.1} parent=1 // pred_fallthru
      _
    // Predicated region
    $region30: #{_score_pallas.1} parent=1 // pred_check
      _
    $region31: #{_score_pallas.1} parent=1 // pred_check_branch
      %66 = sbr.rel (0) target = $region33
    $region32: #{_score_pallas.1} parent=1 // pred_region
      %67 = dma.done [#allocation8], 1024
    $region33: #{_score_pallas.1} parent=1 // pred_fallthru
      _
    %v69 = vld [vmem:[#allocation2] sm:$0x3]
    %v70 = vpack.c.bf16 %v69, %v69
    %v71 = vld [vmem:[#allocation6] sm:$0xf]
    %v72 = vld [vmem:[#allocation6 + $0x4] sm:$0xf]
    %v73 = vld [vmem:[#allocation6 + $0x8] sm:$0xf]
    %v74 = vld [vmem:[#allocation6 + $0xc] sm:$0xf]
    %v75 = vld [vmem:[#allocation6 + $0x10] sm:$0xf]
    %v76 = vld [vmem:[#allocation6 + $0x14] sm:$0xf]
    %v77 = vld [vmem:[#allocation6 + $0x18] sm:$0xf]
    %v78 = vld [vmem:[#allocation6 + $0x1c] sm:$0xf]
    %v79 = vld [vmem:[#allocation6 + $0x20] sm:$0xf]
    %v80 = vld [vmem:[#allocation6 + $0x24] sm:$0xf]
    %v81 = vld [vmem:[#allocation6 + $0x28] sm:$0xf]
    %v82 = vld [vmem:[#allocation6 + $0x2c] sm:$0xf]
    %v83 = vld [vmem:[#allocation6 + $0x30] sm:$0xf]
    %v84 = vld [vmem:[#allocation6 + $0x34] sm:$0xf]
    %v85 = vld [vmem:[#allocation6 + $0x38] sm:$0xf]
    %v86 = vld [vmem:[#allocation6 + $0x3c] sm:$0xf]
    %v103 = vunpack.c.l.b16 %v71
    %v104 = vunpack.c.l.b16 %v72
    %v105 = vunpack.c.l.b16 %v73
    %v106 = vunpack.c.l.b16 %v74
    %v107 = vunpack.c.l.b16 %v75
    %v108 = vunpack.c.l.b16 %v76
    %v109 = vunpack.c.l.b16 %v77
    %v110 = vunpack.c.l.b16 %v78
    %v111 = vunpack.c.l.b16 %v79
    %v112 = vunpack.c.l.b16 %v80
    %v113 = vunpack.c.l.b16 %v81
    %v114 = vunpack.c.l.b16 %v82
    %v115 = vunpack.c.l.b16 %v83
    %v116 = vunpack.c.l.b16 %v84
    %v117 = vunpack.c.l.b16 %v85
    %v118 = vunpack.c.l.b16 %v86
    %v119 = vpack.c.b16 %v104, %v103
    %v120 = vpack.c.b16 %v106, %v105
    %v121 = vpack.c.b16 %v108, %v107
    %v122 = vpack.c.b16 %v110, %v109
    %v123 = vpack.c.b16 %v112, %v111
    %v124 = vpack.c.b16 %v114, %v113
    %v125 = vpack.c.b16 %v116, %v115
    %v126 = vpack.c.b16 %v118, %v117
    %135 = vmatprep.subr.bf16.mxu0 0
    %136 = vmatpush1.bf16.msra.mxu0 %v119
    %137 = vmatprep.subr.bf16.mxu0 0
    %138 = vmatpush1.bf16.msra.mxu0 %v120
    %139 = vmatprep.subr.bf16.mxu0 0
    %140 = vmatpush1.bf16.msra.mxu0 %v121
    %141 = vmatprep.subr.bf16.mxu0 0
    %142 = vmatpush1.bf16.msra.mxu0 %v122
    %143 = vmatprep.subr.bf16.mxu0 0
    %144 = vmatpush1.bf16.msra.mxu0 %v123
    %145 = vmatprep.subr.bf16.mxu0 0
    %146 = vmatpush1.bf16.msra.mxu0 %v124
    %147 = vmatprep.subr.bf16.mxu0 0
    %148 = vmatpush1.bf16.msra.mxu0 %v125
    %149 = vmatprep.subr.bf16.mxu0 0
    %150 = vmatpush1.bf16.msra.mxu0 %v126
    %151 = vmatprep.subr.bf16.mxu0 0
    %152 = vmatpush1.bf16.msra.mxu0 0
    %153 = vmatprep.subr.bf16.mxu0 0
    %154 = vmatpush1.bf16.msra.mxu0 0
    %155 = vmatprep.subr.bf16.mxu0 0
    %156 = vmatpush1.bf16.msra.mxu0 0
    %157 = vmatprep.subr.bf16.mxu0 0
    %158 = vmatpush1.bf16.msra.mxu0 0
    %159 = vmatprep.subr.bf16.mxu0 0
    %160 = vmatpush1.bf16.msra.mxu0 0
    %161 = vmatprep.subr.bf16.mxu0 0
    %162 = vmatpush1.bf16.msra.mxu0 0
    %163 = vmatprep.subr.bf16.mxu0 0
    %164 = vmatpush1.bf16.msra.mxu0 0
    %165 = vmatprep.subr.bf16.mxu0 0
    %166 = vmatpush1.bf16.msra.mxu0 0
    %167 = vmatprep.mubr.bf16.mxu0 0
    %168 = vmatmul.mubr.bf16.gmra.mrb[0].mxu0 %v70
    %v169 = vpop.f32.mrb[0].mxu0
    %v170 = vadd.f32 0.0, %v169
    %v171 = vpop.f32.mrb[0].mxu0
    %v172 = vpop.f32.mrb[0].mxu0
    %v173 = vpop.f32.mrb[0].mxu0
    %174 = vdwg.mxu0
    %v175 = vmul.f32 %v170, %v170
    %vm176 = vcmask 1041408
    %v177 = vsel %vm176, %v175, 0.0
    %178 = vadd.xlane.f32.xlu0 %v177
    %v179 = vpop.xlane.xlu0 %178
    %v180 = vadd.f32 %v179, 1e-08
    %v181 = vrsqrt.pop %v180
    %v182 = vmul.f32 %v170, %v181
    %v183 = vld [vmem:[#allocation4] sm:$0xf]
    %v184 = vpack.c.bf16 %v183, %v183
    %v185 = vld [vmem:[#allocation7] sm:$0xf]
    %v186 = vld [vmem:[#allocation7 + $0x4] sm:$0xf]
    %v187 = vld [vmem:[#allocation7 + $0x8] sm:$0xf]
    %v188 = vld [vmem:[#allocation7 + $0xc] sm:$0xf]
    %v189 = vld [vmem:[#allocation7 + $0x10] sm:$0xf]
    %v190 = vld [vmem:[#allocation7 + $0x14] sm:$0xf]
    %v191 = vld [vmem:[#allocation7 + $0x18] sm:$0xf]
    %v192 = vld [vmem:[#allocation7 + $0x1c] sm:$0xf]
    %v193 = vld [vmem:[#allocation7 + $0x20] sm:$0xf]
    %v194 = vld [vmem:[#allocation7 + $0x24] sm:$0xf]
    %v195 = vld [vmem:[#allocation7 + $0x28] sm:$0xf]
    %v196 = vld [vmem:[#allocation7 + $0x2c] sm:$0xf]
    %v197 = vld [vmem:[#allocation7 + $0x30] sm:$0xf]
    %v198 = vld [vmem:[#allocation7 + $0x34] sm:$0xf]
    %v199 = vld [vmem:[#allocation7 + $0x38] sm:$0xf]
    %v200 = vld [vmem:[#allocation7 + $0x3c] sm:$0xf]
    %v217 = vunpack.c.l.b16 %v185
    %v218 = vunpack.c.l.b16 %v186
    %v219 = vunpack.c.l.b16 %v187
    %v220 = vunpack.c.l.b16 %v188
    %v221 = vunpack.c.l.b16 %v189
    %v222 = vunpack.c.l.b16 %v190
    %v223 = vunpack.c.l.b16 %v191
    %v224 = vunpack.c.l.b16 %v192
    %v225 = vunpack.c.l.b16 %v193
    %v226 = vunpack.c.l.b16 %v194
    %v227 = vunpack.c.l.b16 %v195
    %v228 = vunpack.c.l.b16 %v196
    %v229 = vunpack.c.l.b16 %v197
    %v230 = vunpack.c.l.b16 %v198
    %v231 = vunpack.c.l.b16 %v199
    %v232 = vunpack.c.l.b16 %v200
    %v233 = vpack.c.b16 %v218, %v217
    %v234 = vpack.c.b16 %v220, %v219
    %v235 = vpack.c.b16 %v222, %v221
    %v236 = vpack.c.b16 %v224, %v223
    %v237 = vpack.c.b16 %v226, %v225
    %v238 = vpack.c.b16 %v228, %v227
    %v239 = vpack.c.b16 %v230, %v229
    %v240 = vpack.c.b16 %v232, %v231
    %249 = vmatprep.subr.bf16.mxu0 0
    %250 = vmatpush1.bf16.msra.mxu0 %v233
    %251 = vmatprep.subr.bf16.mxu0 0
    %252 = vmatpush1.bf16.msra.mxu0 %v234
    %253 = vmatprep.subr.bf16.mxu0 0
    %254 = vmatpush1.bf16.msra.mxu0 %v235
    %255 = vmatprep.subr.bf16.mxu0 0
    %256 = vmatpush1.bf16.msra.mxu0 %v236
    %257 = vmatprep.subr.bf16.mxu0 0
    %258 = vmatpush1.bf16.msra.mxu0 %v237
    %259 = vmatprep.subr.bf16.mxu0 0
    %260 = vmatpush1.bf16.msra.mxu0 %v238
    %261 = vmatprep.subr.bf16.mxu0 0
    %262 = vmatpush1.bf16.msra.mxu0 %v239
    %263 = vmatprep.subr.bf16.mxu0 0
    %264 = vmatpush1.bf16.msra.mxu0 %v240
    %265 = vmatprep.subr.bf16.mxu0 0
    %266 = vmatpush1.bf16.msra.mxu0 0
    %267 = vmatprep.subr.bf16.mxu0 0
    %268 = vmatpush1.bf16.msra.mxu0 0
    %269 = vmatprep.subr.bf16.mxu0 0
    %270 = vmatpush1.bf16.msra.mxu0 0
    %271 = vmatprep.subr.bf16.mxu0 0
    %272 = vmatpush1.bf16.msra.mxu0 0
    %273 = vmatprep.subr.bf16.mxu0 0
    %274 = vmatpush1.bf16.msra.mxu0 0
    %275 = vmatprep.subr.bf16.mxu0 0
    %276 = vmatpush1.bf16.msra.mxu0 0
    %277 = vmatprep.subr.bf16.mxu0 0
    %278 = vmatpush1.bf16.msra.mxu0 0
    %279 = vmatprep.subr.bf16.mxu0 0
    %280 = vmatpush1.bf16.msra.mxu0 0
    %281 = vmatprep.mubr.bf16.mxu0 0
    %282 = vmatmul.mubr.bf16.gmra.mrb[0].mxu0 %v184
    %v283 = vpop.f32.mrb[0].mxu0
    %v284 = vadd.f32 0.0, %v283
    %v285 = vpop.f32.mrb[0].mxu0
    %v286 = vpop.f32.mrb[0].mxu0
    %v287 = vpop.f32.mrb[0].mxu0
    %288 = vdwg.mxu0
    %v289 = vmul.f32 %v284, %v284
    %vm290 = vcmask 1043456
    %v291 = vsel %vm290, %v289, 0.0
    %292 = vadd.xlane.f32.xlu0 %v291
    %v293 = vpop.xlane.xlu0 %292
    %v294 = vadd.f32 %v293, 1e-08
    %v295 = vrsqrt.pop %v294
    %v296 = vmul.f32 %v284, %v295
    %v297 = vpack.c.bf16 %v182, %v182
    %v298 = vpack.c.bf16 %v296, %v296
    %299 = vmatprep.subr.bf16.mxu0 0
    %300 = vmatpush1.bf16.xpose.msra.mxu0 %v298
    %301 = vmatprep.subr.bf16.mxu0 0
    %302 = vmatpush1.bf16.xpose.msra.mxu0 0
    %303 = vmatprep.subr.bf16.mxu0 0
    %304 = vmatpush1.bf16.xpose.msra.mxu0 0
    %305 = vmatprep.subr.bf16.mxu0 0
    %306 = vmatpush1.bf16.xpose.msra.mxu0 0
    %307 = vmatprep.subr.bf16.mxu0 0
    %308 = vmatpush1.bf16.xpose.msra.mxu0 0
    %309 = vmatprep.subr.bf16.mxu0 0
    %310 = vmatpush1.bf16.xpose.msra.mxu0 0
    %311 = vmatprep.subr.bf16.mxu0 0
    %312 = vmatpush1.bf16.xpose.msra.mxu0 0
    %313 = vmatprep.subr.bf16.mxu0 0
    %314 = vmatpush1.bf16.xpose.msra.mxu0 0
    %315 = vmatprep.subr.bf16.mxu0 0
    %316 = vmatpush1.bf16.xpose.msra.mxu0 0
    %317 = vmatprep.subr.bf16.mxu0 0
    %318 = vmatpush1.bf16.xpose.msra.mxu0 0
    %319 = vmatprep.subr.bf16.mxu0 0
    %320 = vmatpush1.bf16.xpose.msra.mxu0 0
    %321 = vmatprep.subr.bf16.mxu0 0
    %322 = vmatpush1.bf16.xpose.msra.mxu0 0
    %323 = vmatprep.subr.bf16.mxu0 0
    %324 = vmatpush1.bf16.xpose.msra.mxu0 0
    %325 = vmatprep.subr.bf16.mxu0 0
    %326 = vmatpush1.bf16.xpose.msra.mxu0 0
    %327 = vmatprep.subr.bf16.mxu0 0
    %328 = vmatpush1.bf16.xpose.msra.mxu0 0
    %329 = vmatprep.subr.bf16.mxu0 0
    %330 = vmatpush1.bf16.xpose.msra.mxu0 0
    %331 = vmatprep.mubr.bf16.mxu0 0
    %332 = vmatmul.mubr.bf16.gmra.mrb[0].mxu0 %v297
    %v333 = vpop.f32.mrb[0].mxu0
    %v334 = vadd.f32 0.0, %v333
    %v335 = vpop.f32.mrb[0].mxu0
    %v336 = vpop.f32.mrb[0].mxu0
    %v337 = vpop.f32.mrb[0].mxu0
    %338 = vdwg.mxu0
    %v339 = vpack.c.bf16 %v334, %v334
    %vm340 = vcmask 24576
    %341 = vst.msk [vmem:[%s4] sm:$0x1] %vm340, %v339
    // Predicated region
    $region34: #{_score_pallas.1} parent=1 // pred_check
      _
    $region35: #{_score_pallas.1} parent=1 // pred_check_branch
      %343 = sbr.rel (0) target = $region37
    $region36: #{_score_pallas.1} parent=1 // pred_region
      _
    $region37: #{_score_pallas.1} parent=1 // pred_fallthru
      _
    // Predicated region
    $region38: #{_score_pallas.1} parent=1 // pred_check
      _
    $region39: #{_score_pallas.1} parent=1 // pred_check_branch
      %345 = sbr.rel (0) target = $region41
    $region40: #{_score_pallas.1} parent=1 // pred_region
      _
    $region41: #{_score_pallas.1} parent=1 // pred_fallthru
      _
    %346 = vsyncpa [#allocation3], 1
    %347 = vsyncpa [#allocation5], 1
    %348 = vsyncpa [#allocation8], 1

</llo_original>
